<compile_context>
chip_gen: v7x
topology: tpu7x:2x2x1
jax: 0.10.0
libtpu: 0.0.40
codegen_flags: <defaults>
</compile_context>

<pallas_src>
import functools

import jax
import jax.numpy as jnp
import numpy as np
from jax.experimental import pallas as pl
from jax.experimental.pallas import tpu as pltpu


def _win_sum(a, axis, win):
    """Valid windowed sum of length `win` along `axis` (1 or 2) of a rank-3 array.

    Log-depth tree: power-of-two partial windows are built with offsets
    1, 2, 4, ... and combined via the binary decomposition of `win`; for
    win=7 this is 4 shifted slices + 4 adds per direction instead of 6 + 6.
    All adds are exact f32 adds; shifts are static slices.
    """
    def sl(arr, off, length):
        if axis == 1:
            return arr[:, off:off + length, :]
        return arr[:, :, off:off + length]

    # pows[k] holds windowed sums of length 2**k.
    pows = [a]
    w = 1
    while w * 2 <= win:
        prev = pows[-1]
        lp = prev.shape[axis] - w
        pows.append(sl(prev, 0, lp) + sl(prev, w, lp))
        w *= 2

    out_len = a.shape[axis] - win + 1
    out = None
    off = 0
    for k in range(len(pows) - 1, -1, -1):
        if (win >> k) & 1:
            piece = sl(pows[k], off, out_len)
            out = piece if out is None else out + piece
            off += 1 << k
    return out


def _ssim_kernel(dr_ref, x_ref, y_ref, out_ref, *, win_size, k1, k2):
    T, H, W = x_ref.shape
    Ho = H - win_size + 1
    Wo = W - win_size + 1
    inv_area = 1.0 / float(win_size * win_size)
    cov_norm = float(win_size * win_size) / float(win_size * win_size - 1)

    x = x_ref[...].astype(jnp.float32)      # (T, H, W)
    y = y_ref[...].astype(jnp.float32)      # (T, H, W)
    dr = dr_ref[0]
    c1 = (k1 * dr) ** 2
    c2 = (k2 * dr) ** 2

    def box(im):
        # Separable 7x7 uniform (box) filter, valid conv, batched over the
        # leading image axis; log-depth window sums (see _win_sum).
        rows = _win_sum(im, axis=1, win=win_size)      # (T, Ho, W)
        full = _win_sum(rows, axis=2, win=win_size)    # (T, Ho, Wo)
        return full * inv_area

    ux = box(x)
    uy = box(y)
    uxx = box(x * x)
    uyy = box(y * y)
    uxy = box(x * y)

    # Fused VPU algebra: reuse ux^2 + uy^2 and compute vx + vy in one pass.
    uxux = ux * ux
    uyuy = uy * uy
    uxuy = ux * uy
    s2 = uxux + uyuy                          # ux^2 + uy^2 (reused in denom)
    vxy = cov_norm * (uxy - uxuy)
    vsum = cov_norm * ((uxx + uyy) - s2)      # vx + vy

    numerator = (2.0 * uxuy + c1) * (2.0 * vxy + c2)
    denom = (s2 + c1) * (vsum + c2)
    ssim_map = numerator / denom              # (T, Ho, Wo)

    # Per-image partial sums -> lane-dense (1, T, 128) output block.
    per_img = jnp.sum(jnp.sum(ssim_map, axis=-1), axis=-1, keepdims=True)   # (T, 1)
    out_ref[...] = jnp.broadcast_to(per_img.reshape(1, T, 1), (1, T, 128))


def _vmem_sizes():
    """Per-generation VMEM planning budget and compiler limit (bytes)."""
    cap = 128 * 1024 * 1024
    try:
        cap = int(getattr(pltpu.get_tpu_info(), "vmem_capacity_bytes", cap)) or cap
    except Exception:
        pass
    # ~75% of physical as the scoped limit (48 MiB on 64-MiB v7x, 96 MiB on
    # 128-MiB v5e/v6e); plan block sizes against half of that so double
    # buffering + f32 intermediates keep headroom.
    limit = min(cap * 3 // 4, 100 * 1024 * 1024)
    budget = limit // 2
    return budget, limit


def ssim_loss(x, y, data_range, *, win_size=7, k1=0.01, k2=0.03):
    """Pallas SSIM loss. x, y: (B, C, H, W); data_range: scalar.

    Matches SSIMLoss(spatial_dims=2): per-channel single-channel SSIM with
    channel losses averaged == 1 - global mean over all valid SSIM-map pixels
    of all (batch, channel) images.
    """
    B, C, H, W = x.shape
    assert y.shape == x.shape
    assert H >= win_size and W >= win_size
    N = B * C
    Ho = H - win_size + 1
    Wo = W - win_size + 1

    # Native dtype on the wire; the f32 cast happens inside the kernel.
    x3 = x.reshape(N, H, W)
    y3 = y.reshape(N, H, W)
    dr = jnp.asarray(data_range, jnp.float32).reshape(1)

    vmem_budget, vmem_limit = _vmem_sizes()

    # Images per grid step: (2 inputs x 2 pipeline buffers) at wire dtype plus
    # ~14 live f32 intermediates per pixel must fit the planning budget.
    itemsize = x3.dtype.itemsize
    per_image_bytes = H * W * (4 * itemsize + 64)
    T = int(max(1, min(N, vmem_budget // per_image_bytes)))
    # Parallel grid axis: keep >= 2 blocks (prefer >= 4) when N allows so both
    # v7x TensorCores get work and input DMAs overlap compute.
    target_blocks = min(4, N)
    if target_blocks > 1:
        T = max(1, min(T, -(-N // target_blocks)))

    num_blocks = -(-N // T)
    N_pad = num_blocks * T
    if N_pad != N:
        pad = ((0, N_pad - N), (0, 0), (0, 0))
        x3 = jnp.pad(x3, pad)   # padded (all-zero) images are dropped in the
        y3 = jnp.pad(y3, pad)   # wrapper reduction below.

    kernel = functools.partial(_ssim_kernel, win_size=win_size, k1=k1, k2=k2)

    out = pl.pallas_call(
        kernel,
        out_shape=jax.ShapeDtypeStruct((num_blocks, T, 128), jnp.float32),
        grid_spec=pltpu.PrefetchScalarGridSpec(
            num_scalar_prefetch=0,
            grid=(num_blocks,),
            in_specs=[
                pl.BlockSpec(memory_space=pltpu.MemorySpace.SMEM),   # data_range
                pl.BlockSpec((T, H, W), lambda i: (i, 0, 0)),        # x images
                pl.BlockSpec((T, H, W), lambda i: (i, 0, 0)),        # y images
            ],
            out_specs=pl.BlockSpec((1, T, 128), lambda i: (i, 0, 0)),
        ),
        compiler_params=pltpu.CompilerParams(
            dimension_semantics=("parallel",),          # independent blocks
            vmem_limit_bytes=int(vmem_limit),
        ),
    )(dr, x3, y3)

    per_image = out.reshape(N_pad, 128)[:N, 0]
    return 1.0 - jnp.sum(per_image) / jnp.float32(N * Ho * Wo)


def _ssim_loss_ref(x, y, data_range, win_size=7, k1=0.01, k2=0.03):
    # pure-JAX reference (same math as the PyTorch module, no Pallas)
    B, C, H, W = x.shape
    xf = jnp.asarray(x, jnp.float32)
    yf = jnp.asarray(y, jnp.float32)
    dr = jnp.asarray(data_range, jnp.float32).reshape(())
    c1 = (k1 * dr) ** 2
    c2 = (k2 * dr) ** 2
    Ho, Wo = H - win_size + 1, W - win_size + 1

    def box(im):  # im: (B, C, H, W)
        s = sum(im[:, :, d:d + Ho, :] for d in range(win_size))
        t = sum(s[:, :, :, d:d + Wo] for d in range(win_size))
        return t / (win_size * win_size)

    ux, uy = box(xf), box(yf)
    uxx, uyy, uxy = box(xf * xf), box(yf * yf), box(xf * yf)
    cov_norm = win_size ** 2 / (win_size ** 2 - 1)
    vx = cov_norm * (uxx - ux * ux)
    vy = cov_norm * (uyy - uy * uy)
    vxy = cov_norm * (uxy - ux * uy)
    num = (2 * ux * uy + c1) * (2 * vxy + c2)
    den = (ux ** 2 + uy ** 2 + c1) * (vx + vy + c2)
    return 1.0 - jnp.mean(num / den)


if __name__ == "__main__":
    key = jax.random.PRNGKey(0)
    kx, ky = jax.random.split(key)
    B, C, H, W = 2, 4, 16, 16
    x = jax.random.uniform(kx, (B, C, H, W), dtype=jnp.float32)
    y = x + 0.05 * jax.random.normal(ky, (B, C, H, W), dtype=jnp.float32)
    data_range = jnp.max(x)

    loss = ssim_loss(x, y, data_range)
    loss = jax.block_until_ready(loss)

    ref = jax.block_until_ready(_ssim_loss_ref(x, y, data_range))
    np.testing.assert_allclose(np.asarray(loss), np.asarray(ref), rtol=1e-5, atol=1e-6)

    print("KERNEL_OK")
</pallas_src>

<mosaic_0001>
module attributes {stable_mosaic.version = 11 : i64} {
  func.func @_ssim_kernel(%arg0: i32, %arg1: memref<1xf32, #tpu.memory_space<smem>>, %arg2: memref<2x16x16xf32, #tpu.memory_space<vmem>>, %arg3: memref<2x16x16xf32, #tpu.memory_space<vmem>>, %arg4: memref<1x2x128xf32, #tpu.memory_space<vmem>>) attributes {dimension_semantics = [#tpu.dimension_semantics<parallel>], iteration_bounds = array<i64: 4>, scalar_prefetch = 0 : i64, scratch_operands = 0 : i64, tpu.core_type = #tpu.core_type<tc>, window_params = [{transform_indices = @transform_0, window_bounds = array<i64: 1>}, {transform_indices = @transform_1, window_bounds = array<i64: 2, 16, 16>}, {transform_indices = @transform_2, window_bounds = array<i64: 2, 16, 16>}, {transform_indices = @transform_3, window_bounds = array<i64: 1, 2, 128>}]} {
    %c0 = arith.constant 0 : index
    %c0_0 = arith.constant 0 : index
    %c0_1 = arith.constant 0 : index
    %0 = vector.load %arg2[%c0, %c0_0, %c0_1] : memref<2x16x16xf32, #tpu.memory_space<vmem>>, vector<2x16x16xf32>
    %c0_2 = arith.constant 0 : index
    %c0_3 = arith.constant 0 : index
    %c0_4 = arith.constant 0 : index
    %1 = vector.load %arg3[%c0_2, %c0_3, %c0_4] : memref<2x16x16xf32, #tpu.memory_space<vmem>>, vector<2x16x16xf32>
    %c0_5 = arith.constant 0 : index
    %2 = memref.load %arg1[%c0_5] : memref<1xf32, #tpu.memory_space<smem>>
    %cst = arith.constant 0.00999999977 : f32
    %3 = arith.mulf %cst, %2 : f32
    %4 = arith.mulf %3, %3 : f32
    %cst_6 = arith.constant 3.000000e-02 : f32
    %5 = arith.mulf %cst_6, %2 : f32
    %6 = arith.mulf %5, %5 : f32
    %7 = vector.extract_strided_slice %0 {offsets = [0, 0, 0], sizes = [2, 15, 16], strides = [1, 1, 1]} : vector<2x16x16xf32> to vector<2x15x16xf32>
    %8 = vector.extract_strided_slice %0 {offsets = [0, 1, 0], sizes = [2, 15, 16], strides = [1, 1, 1]} : vector<2x16x16xf32> to vector<2x15x16xf32>
    %9 = arith.addf %7, %8 : vector<2x15x16xf32>
    %10 = vector.extract_strided_slice %9 {offsets = [0, 0, 0], sizes = [2, 13, 16], strides = [1, 1, 1]} : vector<2x15x16xf32> to vector<2x13x16xf32>
    %11 = vector.extract_strided_slice %9 {offsets = [0, 2, 0], sizes = [2, 13, 16], strides = [1, 1, 1]} : vector<2x15x16xf32> to vector<2x13x16xf32>
    %12 = arith.addf %10, %11 : vector<2x13x16xf32>
    %13 = vector.extract_strided_slice %12 {offsets = [0, 0, 0], sizes = [2, 10, 16], strides = [1, 1, 1]} : vector<2x13x16xf32> to vector<2x10x16xf32>
    %14 = vector.extract_strided_slice %9 {offsets = [0, 4, 0], sizes = [2, 10, 16], strides = [1, 1, 1]} : vector<2x15x16xf32> to vector<2x10x16xf32>
    %15 = arith.addf %13, %14 : vector<2x10x16xf32>
    %16 = vector.extract_strided_slice %0 {offsets = [0, 6, 0], sizes = [2, 10, 16], strides = [1, 1, 1]} : vector<2x16x16xf32> to vector<2x10x16xf32>
    %17 = arith.addf %15, %16 : vector<2x10x16xf32>
    %18 = vector.extract_strided_slice %17 {offsets = [0, 0, 0], sizes = [2, 10, 15], strides = [1, 1, 1]} : vector<2x10x16xf32> to vector<2x10x15xf32>
    %19 = vector.extract_strided_slice %17 {offsets = [0, 0, 1], sizes = [2, 10, 15], strides = [1, 1, 1]} : vector<2x10x16xf32> to vector<2x10x15xf32>
    %20 = arith.addf %18, %19 : vector<2x10x15xf32>
    %21 = vector.extract_strided_slice %20 {offsets = [0, 0, 0], sizes = [2, 10, 13], strides = [1, 1, 1]} : vector<2x10x15xf32> to vector<2x10x13xf32>
    %22 = vector.extract_strided_slice %20 {offsets = [0, 0, 2], sizes = [2, 10, 13], strides = [1, 1, 1]} : vector<2x10x15xf32> to vector<2x10x13xf32>
    %23 = arith.addf %21, %22 : vector<2x10x13xf32>
    %24 = vector.extract_strided_slice %23 {offsets = [0, 0, 0], sizes = [2, 10, 10], strides = [1, 1, 1]} : vector<2x10x13xf32> to vector<2x10x10xf32>
    %25 = vector.extract_strided_slice %20 {offsets = [0, 0, 4], sizes = [2, 10, 10], strides = [1, 1, 1]} : vector<2x10x15xf32> to vector<2x10x10xf32>
    %26 = arith.addf %24, %25 : vector<2x10x10xf32>
    %27 = vector.extract_strided_slice %17 {offsets = [0, 0, 6], sizes = [2, 10, 10], strides = [1, 1, 1]} : vector<2x10x16xf32> to vector<2x10x10xf32>
    %28 = arith.addf %26, %27 : vector<2x10x10xf32>
    %cst_7 = arith.constant 0.0204081628 : f32
    %29 = vector.broadcast %cst_7 : f32 to vector<2x10x10xf32>
    %30 = arith.mulf %28, %29 : vector<2x10x10xf32>
    %31 = vector.extract_strided_slice %1 {offsets = [0, 0, 0], sizes = [2, 15, 16], strides = [1, 1, 1]} : vector<2x16x16xf32> to vector<2x15x16xf32>
    %32 = vector.extract_strided_slice %1 {offsets = [0, 1, 0], sizes = [2, 15, 16], strides = [1, 1, 1]} : vector<2x16x16xf32> to vector<2x15x16xf32>
    %33 = arith.addf %31, %32 : vector<2x15x16xf32>
    %34 = vector.extract_strided_slice %33 {offsets = [0, 0, 0], sizes = [2, 13, 16], strides = [1, 1, 1]} : vector<2x15x16xf32> to vector<2x13x16xf32>
    %35 = vector.extract_strided_slice %33 {offsets = [0, 2, 0], sizes = [2, 13, 16], strides = [1, 1, 1]} : vector<2x15x16xf32> to vector<2x13x16xf32>
    %36 = arith.addf %34, %35 : vector<2x13x16xf32>
    %37 = vector.extract_strided_slice %36 {offsets = [0, 0, 0], sizes = [2, 10, 16], strides = [1, 1, 1]} : vector<2x13x16xf32> to vector<2x10x16xf32>
    %38 = vector.extract_strided_slice %33 {offsets = [0, 4, 0], sizes = [2, 10, 16], strides = [1, 1, 1]} : vector<2x15x16xf32> to vector<2x10x16xf32>
    %39 = arith.addf %37, %38 : vector<2x10x16xf32>
    %40 = vector.extract_strided_slice %1 {offsets = [0, 6, 0], sizes = [2, 10, 16], strides = [1, 1, 1]} : vector<2x16x16xf32> to vector<2x10x16xf32>
    %41 = arith.addf %39, %40 : vector<2x10x16xf32>
    %42 = vector.extract_strided_slice %41 {offsets = [0, 0, 0], sizes = [2, 10, 15], strides = [1, 1, 1]} : vector<2x10x16xf32> to vector<2x10x15xf32>
    %43 = vector.extract_strided_slice %41 {offsets = [0, 0, 1], sizes = [2, 10, 15], strides = [1, 1, 1]} : vector<2x10x16xf32> to vector<2x10x15xf32>
    %44 = arith.addf %42, %43 : vector<2x10x15xf32>
    %45 = vector.extract_strided_slice %44 {offsets = [0, 0, 0], sizes = [2, 10, 13], strides = [1, 1, 1]} : vector<2x10x15xf32> to vector<2x10x13xf32>
    %46 = vector.extract_strided_slice %44 {offsets = [0, 0, 2], sizes = [2, 10, 13], strides = [1, 1, 1]} : vector<2x10x15xf32> to vector<2x10x13xf32>
    %47 = arith.addf %45, %46 : vector<2x10x13xf32>
    %48 = vector.extract_strided_slice %47 {offsets = [0, 0, 0], sizes = [2, 10, 10], strides = [1, 1, 1]} : vector<2x10x13xf32> to vector<2x10x10xf32>
    %49 = vector.extract_strided_slice %44 {offsets = [0, 0, 4], sizes = [2, 10, 10], strides = [1, 1, 1]} : vector<2x10x15xf32> to vector<2x10x10xf32>
    %50 = arith.addf %48, %49 : vector<2x10x10xf32>
    %51 = vector.extract_strided_slice %41 {offsets = [0, 0, 6], sizes = [2, 10, 10], strides = [1, 1, 1]} : vector<2x10x16xf32> to vector<2x10x10xf32>
    %52 = arith.addf %50, %51 : vector<2x10x10xf32>
    %cst_8 = arith.constant 0.0204081628 : f32
    %53 = vector.broadcast %cst_8 : f32 to vector<2x10x10xf32>
    %54 = arith.mulf %52, %53 : vector<2x10x10xf32>
    %55 = arith.mulf %0, %0 : vector<2x16x16xf32>
    %56 = vector.extract_strided_slice %55 {offsets = [0, 0, 0], sizes = [2, 15, 16], strides = [1, 1, 1]} : vector<2x16x16xf32> to vector<2x15x16xf32>
    %57 = vector.extract_strided_slice %55 {offsets = [0, 1, 0], sizes = [2, 15, 16], strides = [1, 1, 1]} : vector<2x16x16xf32> to vector<2x15x16xf32>
    %58 = arith.addf %56, %57 : vector<2x15x16xf32>
    %59 = vector.extract_strided_slice %58 {offsets = [0, 0, 0], sizes = [2, 13, 16], strides = [1, 1, 1]} : vector<2x15x16xf32> to vector<2x13x16xf32>
    %60 = vector.extract_strided_slice %58 {offsets = [0, 2, 0], sizes = [2, 13, 16], strides = [1, 1, 1]} : vector<2x15x16xf32> to vector<2x13x16xf32>
    %61 = arith.addf %59, %60 : vector<2x13x16xf32>
    %62 = vector.extract_strided_slice %61 {offsets = [0, 0, 0], sizes = [2, 10, 16], strides = [1, 1, 1]} : vector<2x13x16xf32> to vector<2x10x16xf32>
    %63 = vector.extract_strided_slice %58 {offsets = [0, 4, 0], sizes = [2, 10, 16], strides = [1, 1, 1]} : vector<2x15x16xf32> to vector<2x10x16xf32>
    %64 = arith.addf %62, %63 : vector<2x10x16xf32>
    %65 = vector.extract_strided_slice %55 {offsets = [0, 6, 0], sizes = [2, 10, 16], strides = [1, 1, 1]} : vector<2x16x16xf32> to vector<2x10x16xf32>
    %66 = arith.addf %64, %65 : vector<2x10x16xf32>
    %67 = vector.extract_strided_slice %66 {offsets = [0, 0, 0], sizes = [2, 10, 15], strides = [1, 1, 1]} : vector<2x10x16xf32> to vector<2x10x15xf32>
    %68 = vector.extract_strided_slice %66 {offsets = [0, 0, 1], sizes = [2, 10, 15], strides = [1, 1, 1]} : vector<2x10x16xf32> to vector<2x10x15xf32>
    %69 = arith.addf %67, %68 : vector<2x10x15xf32>
    %70 = vector.extract_strided_slice %69 {offsets = [0, 0, 0], sizes = [2, 10, 13], strides = [1, 1, 1]} : vector<2x10x15xf32> to vector<2x10x13xf32>
    %71 = vector.extract_strided_slice %69 {offsets = [0, 0, 2], sizes = [2, 10, 13], strides = [1, 1, 1]} : vector<2x10x15xf32> to vector<2x10x13xf32>
    %72 = arith.addf %70, %71 : vector<2x10x13xf32>
    %73 = vector.extract_strided_slice %72 {offsets = [0, 0, 0], sizes = [2, 10, 10], strides = [1, 1, 1]} : vector<2x10x13xf32> to vector<2x10x10xf32>
    %74 = vector.extract_strided_slice %69 {offsets = [0, 0, 4], sizes = [2, 10, 10], strides = [1, 1, 1]} : vector<2x10x15xf32> to vector<2x10x10xf32>
    %75 = arith.addf %73, %74 : vector<2x10x10xf32>
    %76 = vector.extract_strided_slice %66 {offsets = [0, 0, 6], sizes = [2, 10, 10], strides = [1, 1, 1]} : vector<2x10x16xf32> to vector<2x10x10xf32>
    %77 = arith.addf %75, %76 : vector<2x10x10xf32>
    %cst_9 = arith.constant 0.0204081628 : f32
    %78 = vector.broadcast %cst_9 : f32 to vector<2x10x10xf32>
    %79 = arith.mulf %77, %78 : vector<2x10x10xf32>
    %80 = arith.mulf %1, %1 : vector<2x16x16xf32>
    %81 = vector.extract_strided_slice %80 {offsets = [0, 0, 0], sizes = [2, 15, 16], strides = [1, 1, 1]} : vector<2x16x16xf32> to vector<2x15x16xf32>
    %82 = vector.extract_strided_slice %80 {offsets = [0, 1, 0], sizes = [2, 15, 16], strides = [1, 1, 1]} : vector<2x16x16xf32> to vector<2x15x16xf32>
    %83 = arith.addf %81, %82 : vector<2x15x16xf32>
    %84 = vector.extract_strided_slice %83 {offsets = [0, 0, 0], sizes = [2, 13, 16], strides = [1, 1, 1]} : vector<2x15x16xf32> to vector<2x13x16xf32>
    %85 = vector.extract_strided_slice %83 {offsets = [0, 2, 0], sizes = [2, 13, 16], strides = [1, 1, 1]} : vector<2x15x16xf32> to vector<2x13x16xf32>
    %86 = arith.addf %84, %85 : vector<2x13x16xf32>
    %87 = vector.extract_strided_slice %86 {offsets = [0, 0, 0], sizes = [2, 10, 16], strides = [1, 1, 1]} : vector<2x13x16xf32> to vector<2x10x16xf32>
    %88 = vector.extract_strided_slice %83 {offsets = [0, 4, 0], sizes = [2, 10, 16], strides = [1, 1, 1]} : vector<2x15x16xf32> to vector<2x10x16xf32>
    %89 = arith.addf %87, %88 : vector<2x10x16xf32>
    %90 = vector.extract_strided_slice %80 {offsets = [0, 6, 0], sizes = [2, 10, 16], strides = [1, 1, 1]} : vector<2x16x16xf32> to vector<2x10x16xf32>
    %91 = arith.addf %89, %90 : vector<2x10x16xf32>
    %92 = vector.extract_strided_slice %91 {offsets = [0, 0, 0], sizes = [2, 10, 15], strides = [1, 1, 1]} : vector<2x10x16xf32> to vector<2x10x15xf32>
    %93 = vector.extract_strided_slice %91 {offsets = [0, 0, 1], sizes = [2, 10, 15], strides = [1, 1, 1]} : vector<2x10x16xf32> to vector<2x10x15xf32>
    %94 = arith.addf %92, %93 : vector<2x10x15xf32>
    %95 = vector.extract_strided_slice %94 {offsets = [0, 0, 0], sizes = [2, 10, 13], strides = [1, 1, 1]} : vector<2x10x15xf32> to vector<2x10x13xf32>
    %96 = vector.extract_strided_slice %94 {offsets = [0, 0, 2], sizes = [2, 10, 13], strides = [1, 1, 1]} : vector<2x10x15xf32> to vector<2x10x13xf32>
    %97 = arith.addf %95, %96 : vector<2x10x13xf32>
    %98 = vector.extract_strided_slice %97 {offsets = [0, 0, 0], sizes = [2, 10, 10], strides = [1, 1, 1]} : vector<2x10x13xf32> to vector<2x10x10xf32>
    %99 = vector.extract_strided_slice %94 {offsets = [0, 0, 4], sizes = [2, 10, 10], strides = [1, 1, 1]} : vector<2x10x15xf32> to vector<2x10x10xf32>
    %100 = arith.addf %98, %99 : vector<2x10x10xf32>
    %101 = vector.extract_strided_slice %91 {offsets = [0, 0, 6], sizes = [2, 10, 10], strides = [1, 1, 1]} : vector<2x10x16xf32> to vector<2x10x10xf32>
    %102 = arith.addf %100, %101 : vector<2x10x10xf32>
    %cst_10 = arith.constant 0.0204081628 : f32
    %103 = vector.broadcast %cst_10 : f32 to vector<2x10x10xf32>
    %104 = arith.mulf %102, %103 : vector<2x10x10xf32>
    %105 = arith.mulf %0, %1 : vector<2x16x16xf32>
    %106 = vector.extract_strided_slice %105 {offsets = [0, 0, 0], sizes = [2, 15, 16], strides = [1, 1, 1]} : vector<2x16x16xf32> to vector<2x15x16xf32>
    %107 = vector.extract_strided_slice %105 {offsets = [0, 1, 0], sizes = [2, 15, 16], strides = [1, 1, 1]} : vector<2x16x16xf32> to vector<2x15x16xf32>
    %108 = arith.addf %106, %107 : vector<2x15x16xf32>
    %109 = vector.extract_strided_slice %108 {offsets = [0, 0, 0], sizes = [2, 13, 16], strides = [1, 1, 1]} : vector<2x15x16xf32> to vector<2x13x16xf32>
    %110 = vector.extract_strided_slice %108 {offsets = [0, 2, 0], sizes = [2, 13, 16], strides = [1, 1, 1]} : vector<2x15x16xf32> to vector<2x13x16xf32>
    %111 = arith.addf %109, %110 : vector<2x13x16xf32>
    %112 = vector.extract_strided_slice %111 {offsets = [0, 0, 0], sizes = [2, 10, 16], strides = [1, 1, 1]} : vector<2x13x16xf32> to vector<2x10x16xf32>
    %113 = vector.extract_strided_slice %108 {offsets = [0, 4, 0], sizes = [2, 10, 16], strides = [1, 1, 1]} : vector<2x15x16xf32> to vector<2x10x16xf32>
    %114 = arith.addf %112, %113 : vector<2x10x16xf32>
    %115 = vector.extract_strided_slice %105 {offsets = [0, 6, 0], sizes = [2, 10, 16], strides = [1, 1, 1]} : vector<2x16x16xf32> to vector<2x10x16xf32>
    %116 = arith.addf %114, %115 : vector<2x10x16xf32>
    %117 = vector.extract_strided_slice %116 {offsets = [0, 0, 0], sizes = [2, 10, 15], strides = [1, 1, 1]} : vector<2x10x16xf32> to vector<2x10x15xf32>
    %118 = vector.extract_strided_slice %116 {offsets = [0, 0, 1], sizes = [2, 10, 15], strides = [1, 1, 1]} : vector<2x10x16xf32> to vector<2x10x15xf32>
    %119 = arith.addf %117, %118 : vector<2x10x15xf32>
    %120 = vector.extract_strided_slice %119 {offsets = [0, 0, 0], sizes = [2, 10, 13], strides = [1, 1, 1]} : vector<2x10x15xf32> to vector<2x10x13xf32>
    %121 = vector.extract_strided_slice %119 {offsets = [0, 0, 2], sizes = [2, 10, 13], strides = [1, 1, 1]} : vector<2x10x15xf32> to vector<2x10x13xf32>
    %122 = arith.addf %120, %121 : vector<2x10x13xf32>
    %123 = vector.extract_strided_slice %122 {offsets = [0, 0, 0], sizes = [2, 10, 10], strides = [1, 1, 1]} : vector<2x10x13xf32> to vector<2x10x10xf32>
    %124 = vector.extract_strided_slice %119 {offsets = [0, 0, 4], sizes = [2, 10, 10], strides = [1, 1, 1]} : vector<2x10x15xf32> to vector<2x10x10xf32>
    %125 = arith.addf %123, %124 : vector<2x10x10xf32>
    %126 = vector.extract_strided_slice %116 {offsets = [0, 0, 6], sizes = [2, 10, 10], strides = [1, 1, 1]} : vector<2x10x16xf32> to vector<2x10x10xf32>
    %127 = arith.addf %125, %126 : vector<2x10x10xf32>
    %cst_11 = arith.constant 0.0204081628 : f32
    %128 = vector.broadcast %cst_11 : f32 to vector<2x10x10xf32>
    %129 = arith.mulf %127, %128 : vector<2x10x10xf32>
    %130 = arith.mulf %30, %30 : vector<2x10x10xf32>
    %131 = arith.mulf %54, %54 : vector<2x10x10xf32>
    %132 = arith.mulf %30, %54 : vector<2x10x10xf32>
    %133 = arith.addf %130, %131 : vector<2x10x10xf32>
    %134 = arith.subf %129, %132 : vector<2x10x10xf32>
    %cst_12 = arith.constant 1.02083337 : f32
    %135 = vector.broadcast %cst_12 : f32 to vector<2x10x10xf32>
    %136 = arith.mulf %135, %134 : vector<2x10x10xf32>
    %137 = arith.addf %79, %104 : vector<2x10x10xf32>
    %138 = arith.subf %137, %133 : vector<2x10x10xf32>
    %cst_13 = arith.constant 1.02083337 : f32
    %139 = vector.broadcast %cst_13 : f32 to vector<2x10x10xf32>
    %140 = arith.mulf %139, %138 : vector<2x10x10xf32>
    %cst_14 = arith.constant 2.000000e+00 : f32
    %141 = vector.broadcast %cst_14 : f32 to vector<2x10x10xf32>
    %142 = arith.mulf %141, %132 : vector<2x10x10xf32>
    %143 = vector.broadcast %4 : f32 to vector<2x10x10xf32>
    %144 = arith.addf %142, %143 : vector<2x10x10xf32>
    %cst_15 = arith.constant 2.000000e+00 : f32
    %145 = vector.broadcast %cst_15 : f32 to vector<2x10x10xf32>
    %146 = arith.mulf %145, %136 : vector<2x10x10xf32>
    %147 = vector.broadcast %6 : f32 to vector<2x10x10xf32>
    %148 = arith.addf %146, %147 : vector<2x10x10xf32>
    %149 = arith.mulf %144, %148 : vector<2x10x10xf32>
    %150 = vector.broadcast %4 : f32 to vector<2x10x10xf32>
    %151 = arith.addf %133, %150 : vector<2x10x10xf32>
    %152 = vector.broadcast %6 : f32 to vector<2x10x10xf32>
    %153 = arith.addf %140, %152 : vector<2x10x10xf32>
    %154 = arith.mulf %151, %153 : vector<2x10x10xf32>
    %155 = arith.divf %149, %154 : vector<2x10x10xf32>
    %cst_16 = arith.constant dense<0.000000e+00> : vector<2x10xf32>
    %156 = vector.multi_reduction <add>, %155, %cst_16 [2] : vector<2x10x10xf32> to vector<2x10xf32>
    %cst_17 = arith.constant dense<0.000000e+00> : vector<2xf32>
    %157 = vector.multi_reduction <add>, %156, %cst_17 [1] : vector<2x10xf32> to vector<2xf32>
    %158 = vector.shape_cast %157 : vector<2xf32> to vector<2x1xf32>
    %159 = vector.shape_cast %158 : vector<2x1xf32> to vector<1x2x1xf32>
    %160 = vector.shape_cast %159 : vector<1x2x1xf32> to vector<1x2x1xf32>
    %161 = vector.broadcast %160 : vector<1x2x1xf32> to vector<1x2x128xf32>
    %c0_18 = arith.constant 0 : index
    %c0_19 = arith.constant 0 : index
    %c0_20 = arith.constant 0 : index
    %162 = vector.load %arg4[%c0_18, %c0_19, %c0_20] : memref<1x2x128xf32, #tpu.memory_space<vmem>>, vector<1x2x128xf32>
    tpu.vector_store %arg4[%c0_18, %c0_19, %c0_20], %161 {strides = array<i32>} : memref<1x2x128xf32, #tpu.memory_space<vmem>>, vector<1x2x128xf32>,
    return
  }
  func.func @transform_0(%arg0: i32) -> i32 {
    %c0_i32 = arith.constant 0 : i32
    %c0_i32_0 = arith.constant 0 : i32
    return %c0_i32 : i32
  }
  func.func @transform_1(%arg0: i32) -> (i32, i32, i32) {
    %c0_i32 = arith.constant 0 : i32
    %c0_i32_0 = arith.constant 0 : i32
    %c0_i32_1 = arith.constant 0 : i32
    return %arg0, %c0_i32, %c0_i32_0 : i32, i32, i32
  }
  func.func @transform_2(%arg0: i32) -> (i32, i32, i32) {
    %c0_i32 = arith.constant 0 : i32
    %c0_i32_0 = arith.constant 0 : i32
    %c0_i32_1 = arith.constant 0 : i32
    return %arg0, %c0_i32, %c0_i32_0 : i32, i32, i32
  }
  func.func @transform_3(%arg0: i32) -> (i32, i32, i32) {
    %c0_i32 = arith.constant 0 : i32
    %c0_i32_0 = arith.constant 0 : i32
    %c0_i32_1 = arith.constant 0 : i32
    return %arg0, %c0_i32, %c0_i32_0 : i32, i32, i32
  }
}

</mosaic_0001>

<llo_original>
// kernel: tpu_custom_call.1
$region0: #{tpu_custom_call.1}
  #allocation0 [shape = 'u32[]', space=smem, size = 0x4, offset = 0x4, fixed_abs, tag = 'smem constant byte address 0x4 - core index']
  #allocation1 [shape = 'u32[144,128]{1,0:T(1,128)}', space=vmem, size = 0x12000, scoped, tag = 'internal scratch']
  #allocation2 [shape = 'f32[1]{0:T(128)S(6)}', space=smem, size = 0x200, scoped, tag = 'scoped memory for tpu_custom_call.1']
  %s0 = inlined_call_operand.<no memory space> [shape: f32[1], index: 0, kind: input, shape index: {}]
  %s1 = inlined_call_operand.hbm [shape: f32[8,16,16], index: 1, kind: input, shape index: {}]
  %s2 = inlined_call_operand.hbm [shape: f32[8,16,16], index: 2, kind: input, shape index: {}]
  %s3 = inlined_call_operand.hbm [shape: f32[4,2,128], index: 3, kind: output, shape index: {}]
  %s4 = sld [smem:[#allocation0]]
  $region53: #{tpu_custom_call.1} parent=0
    _
  %s6 = ssub.s32 1, %s4
  %s7 = scalar_select 0, %s6, %s4
  %8 = sst [smem:[#allocation2]] %s0
  $region1: #{tpu_custom_call.1} parent=0
    #allocation3 [shape = 'u8[32768]{0}', space=vmem, size = 0x8000, scoped, tag = 'input window, operand 1']
    #allocation4 [shape = 's32[2]{0}', space=sflag, size = 0x8, scoped, tag = 'scoped memory for tpu_custom_call.1']
    #allocation5 [shape = 's32[2]{0}', space=sflag, size = 0x8, scoped, tag = 'scoped memory for tpu_custom_call.1']
    #allocation6 [shape = 'u8[32768]{0}', space=vmem, size = 0x8000, scoped, tag = 'input window, operand 2']
    #allocation7 [shape = 's32[2]{0}', space=sflag, size = 0x8, scoped, tag = 'scoped memory for tpu_custom_call.1']
    #allocation8 [shape = 'u8[2048]{0}', space=vmem, size = 0x800, scoped, tag = 'output window, operand 0']
    %9 = vsyncpa [#allocation4], 0
    %s10 = scalar_lea.sflag [#allocation4], 1
    %11 = vsyncpa %s10, 0
    %12 = vsyncpa [#allocation7], 0
    %s13 = scalar_lea.sflag [#allocation7], 1
    %14 = vsyncpa %s13, 0
    %15 = vsyncpa [#allocation5], 0
    %s16 = scalar_lea.sflag [#allocation5], 1
    %17 = vsyncpa %s16, 0
    loop: start=0, step=1, limit=6
    $region2: #{tpu_custom_call.1} parent=1 // loop_pre_header
      _
    $region3: #{tpu_custom_call.1} parent=1 // loop_header
      %s19 = sphi 0, %s23
      %p20 = scmp.ge.s32.totalorder %s19, 6
      %s27 = sphi 0, %s27
      %s29 = sphi 0, %s27
      %s30 = sphi 0, %s29
      %s44 = sphi 0, %s30
      %s50 = sphi 0, %s52
      %s53 = sphi 0, %s50
      %s54 = sphi 0, %s53
      %s70 = sphi 0, %s54
      %s76 = sphi 0, %s78
      %s79 = sphi 0, %s76
      %s80 = sphi 0, %s79
      %s96 = sphi 0, %s80
      %s102 = sphi 0, %s104
      %s105 = sphi 0, %s102
      %s106 = sphi 0, %s105
      %s122 = sphi 0, %s106
    $region4: #{tpu_custom_call.1} parent=1 // loop_header_branch
      %22 = sbr.rel (%p20) target = $region8
    $region5: #{tpu_custom_call.1} parent=1 // loop_body
      %s24 = ssub.s32 %s19, 1
      %s25 = ssub.s32 %s19, 2
      %s26 = sadd.s32 %s19, 1
      %s28 = sadd.s32 %s27, 1
      %p31 = scmp.eq.s32.totalorder %s19, 3
      %p32 = scmp.ne.s32.totalorder %s27, %s29
      %p33 = scmp.eq.s32.totalorder %s19, 0
      %p34 = por %p32, %p33
      %p35 = scmp.ne.s32.totalorder %s27, %s29
      %p36 = scmp.eq.s32.totalorder %s24, 3
      %p37 = por %p35, %p36
      %p38 = scmp.ne.s32.totalorder %s29, %s30
      %p39 = scmp.eq.s32.totalorder %s24, 0
      %p40 = por %p38, %p39
      %p41 = scmp.ne.s32.totalorder %s29, %s30
      %p42 = scmp.eq.s32.totalorder %s25, 3
      %p43 = por %p41, %p42
      %p45 = scmp.ne.s32.totalorder %s30, %s44
      %p46 = scmp.eq.s32.totalorder %s25, 0
      %p47 = por %p45, %p46
      %s48 = ssub.s32 %s19, %s26
      %p49 = scmp.eq.s32.totalorder %s48, 0
      %s51 = sadd.s32 %s50, 1
      %s52 = scalar_select %p49, %s50, %s51
      %p55 = pneg %p49
      %p56 = scmp.eq.s32.totalorder %s19, 3
      %p57 = por %p55, %p56
      %p58 = scmp.ne.s32.totalorder %s50, %s53
      %p59 = scmp.eq.s32.totalorder %s19, 0
      %p60 = por %p58, %p59
      %p61 = scmp.ne.s32.totalorder %s50, %s53
      %p62 = scmp.eq.s32.totalorder %s24, 3
      %p63 = por %p61, %p62
      %p64 = scmp.ne.s32.totalorder %s53, %s54
      %p65 = scmp.eq.s32.totalorder %s24, 0
      %p66 = por %p64, %p65
      %p67 = scmp.ne.s32.totalorder %s53, %s54
      %p68 = scmp.eq.s32.totalorder %s25, 3
      %p69 = por %p67, %p68
      %p71 = scmp.ne.s32.totalorder %s54, %s70
      %p72 = scmp.eq.s32.totalorder %s25, 0
      %p73 = por %p71, %p72
      %s74 = ssub.s32 %s19, %s26
      %p75 = scmp.eq.s32.totalorder %s74, 0
      %s77 = sadd.s32 %s76, 1
      %s78 = scalar_select %p75, %s76, %s77
      %p81 = pneg %p75
      %p82 = scmp.eq.s32.totalorder %s19, 3
      %p83 = por %p81, %p82
      %p84 = scmp.ne.s32.totalorder %s76, %s79
      %p85 = scmp.eq.s32.totalorder %s19, 0
      %p86 = por %p84, %p85
      %p87 = scmp.ne.s32.totalorder %s76, %s79
      %p88 = scmp.eq.s32.totalorder %s24, 3
      %p89 = por %p87, %p88
      %p90 = scmp.ne.s32.totalorder %s79, %s80
      %p91 = scmp.eq.s32.totalorder %s24, 0
      %p92 = por %p90, %p91
      %p93 = scmp.ne.s32.totalorder %s79, %s80
      %p94 = scmp.eq.s32.totalorder %s25, 3
      %p95 = por %p93, %p94
      %p97 = scmp.ne.s32.totalorder %s80, %s96
      %p98 = scmp.eq.s32.totalorder %s25, 0
      %p99 = por %p97, %p98
      %s100 = ssub.s32 %s19, %s26
      %p101 = scmp.eq.s32.totalorder %s100, 0
      %s103 = sadd.s32 %s102, 1
      %s104 = scalar_select %p101, %s102, %s103
      %p107 = pneg %p101
      %p108 = scmp.eq.s32.totalorder %s19, 3
      %p109 = por %p107, %p108
      %p110 = scmp.ne.s32.totalorder %s102, %s105
      %p111 = scmp.eq.s32.totalorder %s19, 0
      %p112 = por %p110, %p111
      %p113 = scmp.ne.s32.totalorder %s102, %s105
      %p114 = scmp.eq.s32.totalorder %s24, 3
      %p115 = por %p113, %p114
      %p116 = scmp.ne.s32.totalorder %s105, %s106
      %p117 = scmp.eq.s32.totalorder %s24, 0
      %p118 = por %p116, %p117
      %p119 = scmp.ne.s32.totalorder %s105, %s106
      %p120 = scmp.eq.s32.totalorder %s25, 3
      %p121 = por %p119, %p120
      %p123 = scmp.ne.s32.totalorder %s106, %s122
      %p124 = scmp.eq.s32.totalorder %s25, 0
      %p125 = por %p123, %p124
      %p126 = scmp.le.s32.totalorder 1, %s19
      %p127 = scmp.lt.s32.totalorder %s19, 5
      %p128 = pnand %p126, %p127
      %p129 = pneg %p128
      // Predicated region
      $region9: #{tpu_custom_call.1} parent=5 // pred_check
        _
      $region10: #{tpu_custom_call.1} parent=5 // pred_check_branch
        %131 = sbr.rel (%p128) target = $region12
      $region11: #{tpu_custom_call.1} parent=5 // pred_region
        %s132 = ssub.s32 %s19, 1
        // Predicated region
        $region13: #{tpu_custom_call.1} parent=11 // pred_check
          %p133 = pneg %p40
        $region14: #{tpu_custom_call.1} parent=11 // pred_check_branch
          %135 = sbr.rel (%p133) target = $region16
        $region15: #{tpu_custom_call.1} parent=11 // pred_region
          _
        $region16: #{tpu_custom_call.1} parent=11 // pred_fallthru
          _
      $region12: #{tpu_custom_call.1} parent=5 // pred_fallthru
        _
      %p136 = scmp.lt.s32.totalorder %s19, 4
      // Predicated region
      $region17: #{tpu_custom_call.1} parent=5 // pred_check
        %p137 = pneg %p136
      $region18: #{tpu_custom_call.1} parent=5 // pred_check_branch
        %139 = sbr.rel (%p137) target = $region20
      $region19: #{tpu_custom_call.1} parent=5 // pred_region
        // Predicated region
        $region21: #{tpu_custom_call.1} parent=19 // pred_check
          %p140 = pneg %p60
        $region22: #{tpu_custom_call.1} parent=19 // pred_check_branch
          %142 = sbr.rel (%p140) target = $region24
        $region23: #{tpu_custom_call.1} parent=19 // pred_region
          %s143 = sand.u32 %s50, 1
          %s144 = scalar_lea.sflag [#allocation4], %s143
          %s145 = sand.u32 %s50, 1
          %s146 = smul.addr %s145, 32
          %s147 = scalar_lea.vmem [#allocation3], %s146
          %s148 = smul.u32 2, %s19
          %s150 = ssub.s32 512, 512
          %151 = vsyncadd %s144, %s150
          %s152 = smul.addr %s148, 2
          %s153 = smul.addr %s152, 128
          %s154 = scalar_lea.hbm %s1, %s153
          %s155 = sshll.u32 %s147, 4
          %s156 = int_to_ptr.vmem [resolvable:$true] %s155
          %161 = dma.hbm_to_vmem [thread:$0]  %s154, 512, %s156, %s144, 128, 128, 8
        $region24: #{tpu_custom_call.1} parent=19 // pred_fallthru
          _
        // Predicated region
        $region25: #{tpu_custom_call.1} parent=19 // pred_check
          %p162 = pneg %p86
        $region26: #{tpu_custom_call.1} parent=19 // pred_check_branch
          %164 = sbr.rel (%p162) target = $region28
        $region27: #{tpu_custom_call.1} parent=19 // pred_region
          %s165 = sand.u32 %s76, 1
          %s166 = scalar_lea.sflag [#allocation7], %s165
          %s167 = sand.u32 %s76, 1
          %s168 = smul.addr %s167, 32
          %s169 = scalar_lea.vmem [#allocation6], %s168
          %s170 = smul.u32 2, %s19
          %s172 = ssub.s32 512, 512
          %173 = vsyncadd %s166, %s172
          %s174 = smul.addr %s170, 2
          %s175 = smul.addr %s174, 128
          %s176 = scalar_lea.hbm %s2, %s175
          %s177 = sshll.u32 %s169, 4
          %s178 = int_to_ptr.vmem [resolvable:$true] %s177
          %183 = dma.hbm_to_vmem [thread:$0]  %s176, 512, %s178, %s166, 128, 128, 8
        $region28: #{tpu_custom_call.1} parent=19 // pred_fallthru
          _
      $region20: #{tpu_custom_call.1} parent=5 // pred_fallthru
        _
      %p184 = scmp.le.s32.totalorder 1, %s19
      %p185 = scmp.lt.s32.totalorder %s19, 5
      %p186 = pnand %p184, %p185
      %p187 = pneg %p186
      // Predicated region
      $region29: #{tpu_custom_call.1} parent=5 // pred_check
        _
      $region30: #{tpu_custom_call.1} parent=5 // pred_check_branch
        %189 = sbr.rel (%p186) target = $region32
      $region31: #{tpu_custom_call.1} parent=5 // pred_region
        %s190 = ssub.s32 %s19, 1
        %s191 = sand.u32 %s53, 1
        %s192 = scalar_lea.sflag [#allocation4], %s191
        %s193 = sand.u32 %s53, 1
        %s194 = smul.addr %s193, 32
        %s195 = scalar_lea.vmem [#allocation3], %s194
        // Predicated region
        $region33: #{tpu_custom_call.1} parent=31 // pred_check
          %p196 = pneg %p66
        $region34: #{tpu_custom_call.1} parent=31 // pred_check_branch
          %198 = sbr.rel (%p196) target = $region36
        $region35: #{tpu_custom_call.1} parent=31 // pred_region
          %199 = dma.done %s192, 512
        $region36: #{tpu_custom_call.1} parent=31 // pred_fallthru
          _
        %s200 = sand.u32 %s79, 1
        %s201 = scalar_lea.sflag [#allocation7], %s200
        %s202 = sand.u32 %s79, 1
        %s203 = smul.addr %s202, 32
        %s204 = scalar_lea.vmem [#allocation6], %s203
        // Predicated region
        $region37: #{tpu_custom_call.1} parent=31 // pred_check
          %p205 = pneg %p92
        $region38: #{tpu_custom_call.1} parent=31 // pred_check_branch
          %207 = sbr.rel (%p205) target = $region40
        $region39: #{tpu_custom_call.1} parent=31 // pred_region
          %208 = dma.done %s201, 512
        $region40: #{tpu_custom_call.1} parent=31 // pred_fallthru
          _
        %p209 = pneg %p40
        %p210 = pneg %p37
        %s211 = sand.u32 %s53, 1
        %s212 = scalar_lea.sflag [#allocation4], %s211
        %s213 = sand.u32 %s53, 1
        %s214 = smul.addr %s213, 32
        %s215 = scalar_lea.vmem [#allocation3], %s214
        %p216 = pneg %p66
        %p217 = pneg %p63
        %s218 = sand.u32 %s79, 1
        %s219 = scalar_lea.sflag [#allocation7], %s218
        %s220 = sand.u32 %s79, 1
        %s221 = smul.addr %s220, 32
        %s222 = scalar_lea.vmem [#allocation6], %s221
        %p223 = pneg %p92
        %p224 = pneg %p89
        %p225 = pneg %p118
        %p226 = pneg %p115
        %s227 = sand.u32 %s105, 1
        %s228 = scalar_lea.sflag [#allocation5], %s227
        %s229 = sand.u32 %s105, 1
        %s230 = smul.addr %s229, 2
        %s231 = scalar_lea.vmem [#allocation8], %s230
        %s232 = smul.u32 2, %s24
        %s233 = smul.u32 2, %s24
        %v234 = vld [vmem:[%s195] sm:$0xff]
        %v235 = vld [vmem:[%s195 + $0x8] sm:$0xff]
        %v236 = vld [vmem:[%s195 + $0x10] sm:$0xff]
        %v237 = vld [vmem:[%s195 + $0x18] sm:$0xff]
        %v238 = vld [vmem:[%s204] sm:$0xff]
        %v239 = vld [vmem:[%s204 + $0x8] sm:$0xff]
        %v240 = vld [vmem:[%s204 + $0x10] sm:$0xff]
        %v241 = vld [vmem:[%s204 + $0x18] sm:$0xff]
        %s242 = sld [smem:[#allocation2]]
        %s243 = smul.f32 %s242, 0.01
        %s244 = smul.f32 %s243, %s243
        %s245 = smul.f32 %s242, 0.03
        %s246 = smul.f32 %s245, %s245
        %vm251 = vcmask 1046528
        %v252 = vrot.slane %v234, 1
        %v253 = vrot.slane %v235, 1
        %v254 = vsel %vm251, %v252, %v253
        %v255 = vrot.slane %v236, 1
        %v256 = vrot.slane %v237, 1
        %v257 = vsel %vm251, %v255, %v256
        %v262 = vadd.f32 %v234, %v254
        %v263 = vadd.f32 %v235, %v253
        %v264 = vadd.f32 %v236, %v257
        %v265 = vadd.f32 %v237, %v256
        %vm270 = vcmask 1045504
        %v271 = vrot.slane %v262, 2
        %v272 = vrot.slane %v263, 2
        %v273 = vsel %vm270, %v271, %v272
        %v274 = vrot.slane %v264, 2
        %v275 = vrot.slane %v265, 2
        %v276 = vsel %vm270, %v274, %v275
        %v281 = vadd.f32 %v262, %v273
        %v282 = vadd.f32 %v263, %v272
        %v283 = vadd.f32 %v264, %v276
        %v284 = vadd.f32 %v265, %v275
        %vm285 = vcmask 1043456
        %v286 = vrot.slane %v262, 4
        %v287 = vrot.slane %v263, 4
        %v288 = vsel %vm285, %v286, %v287
        %v289 = vrot.slane %v264, 4
        %v290 = vrot.slane %v265, 4
        %v291 = vsel %vm285, %v289, %v290
        %v296 = vadd.f32 %v281, %v288
        %v297 = vadd.f32 %v282, %v287
        %v298 = vadd.f32 %v283, %v291
        %v299 = vadd.f32 %v284, %v290
        %vm300 = vcmask 1041408
        %v301 = vrot.slane %v234, 6
        %v302 = vrot.slane %v235, 6
        %v303 = vsel %vm300, %v301, %v302
        %v304 = vrot.slane %v236, 6
        %v305 = vrot.slane %v237, 6
        %v306 = vsel %vm300, %v304, %v305
        %v311 = vadd.f32 %v296, %v303
        %v312 = vadd.f32 %v297, %v302
        %v313 = vadd.f32 %v298, %v306
        %v314 = vadd.f32 %v299, %v305
        %319 = vrot.lane.b32.xlu0 %v311, 127
        %v320 = vpop.permute.xlu0 %319
        %321 = vrot.lane.b32.xlu0 %v312, 127
        %v322 = vpop.permute.xlu0 %321
        %323 = vrot.lane.b32.xlu0 %v313, 127
        %v324 = vpop.permute.xlu0 %323
        %325 = vrot.lane.b32.xlu0 %v314, 127
        %v326 = vpop.permute.xlu0 %325
        %v331 = vadd.f32 %v311, %v320
        %v332 = vadd.f32 %v312, %v322
        %v333 = vadd.f32 %v313, %v324
        %v334 = vadd.f32 %v314, %v326
        %339 = vrot.lane.b32.xlu0 %v331, 126
        %v340 = vpop.permute.xlu0 %339
        %341 = vrot.lane.b32.xlu0 %v332, 126
        %v342 = vpop.permute.xlu0 %341
        %343 = vrot.lane.b32.xlu0 %v333, 126
        %v344 = vpop.permute.xlu0 %343
        %345 = vrot.lane.b32.xlu0 %v334, 126
        %v346 = vpop.permute.xlu0 %345
        %v351 = vadd.f32 %v331, %v340
        %v352 = vadd.f32 %v332, %v342
        %v353 = vadd.f32 %v333, %v344
        %v354 = vadd.f32 %v334, %v346
        %355 = vrot.lane.b32.xlu0 %v331, 124
        %v356 = vpop.permute.xlu0 %355
        %357 = vrot.lane.b32.xlu0 %v332, 124
        %v358 = vpop.permute.xlu0 %357
        %359 = vrot.lane.b32.xlu0 %v333, 124
        %v360 = vpop.permute.xlu0 %359
        %361 = vrot.lane.b32.xlu0 %v334, 124
        %v362 = vpop.permute.xlu0 %361
        %v367 = vadd.f32 %v351, %v356
        %v368 = vadd.f32 %v352, %v358
        %v369 = vadd.f32 %v353, %v360
        %v370 = vadd.f32 %v354, %v362
        %371 = vrot.lane.b32.xlu0 %v311, 122
        %v372 = vpop.permute.xlu0 %371
        %373 = vrot.lane.b32.xlu0 %v312, 122
        %v374 = vpop.permute.xlu0 %373
        %375 = vrot.lane.b32.xlu0 %v313, 122
        %v376 = vpop.permute.xlu0 %375
        %377 = vrot.lane.b32.xlu0 %v314, 122
        %v378 = vpop.permute.xlu0 %377
        %v383 = vadd.f32 %v367, %v372
        %v384 = vadd.f32 %v368, %v374
        %v385 = vadd.f32 %v369, %v376
        %v386 = vadd.f32 %v370, %v378
        %v387 = vmul.f32 %v383, 0.020408163
        %v388 = vmul.f32 %v384, 0.020408163
        %v389 = vmul.f32 %v385, 0.020408163
        %v390 = vmul.f32 %v386, 0.020408163
        %v395 = vrot.slane %v238, 1
        %v396 = vrot.slane %v239, 1
        %v397 = vsel %vm251, %v395, %v396
        %v398 = vrot.slane %v240, 1
        %v399 = vrot.slane %v241, 1
        %v400 = vsel %vm251, %v398, %v399
        %v405 = vadd.f32 %v238, %v397
        %v406 = vadd.f32 %v239, %v396
        %v407 = vadd.f32 %v240, %v400
        %v408 = vadd.f32 %v241, %v399
        %v413 = vrot.slane %v405, 2
        %v414 = vrot.slane %v406, 2
        %v415 = vsel %vm270, %v413, %v414
        %v416 = vrot.slane %v407, 2
        %v417 = vrot.slane %v408, 2
        %v418 = vsel %vm270, %v416, %v417
        %v423 = vadd.f32 %v405, %v415
        %v424 = vadd.f32 %v406, %v414
        %v425 = vadd.f32 %v407, %v418
        %v426 = vadd.f32 %v408, %v417
        %v427 = vrot.slane %v405, 4
        %v428 = vrot.slane %v406, 4
        %v429 = vsel %vm285, %v427, %v428
        %v430 = vrot.slane %v407, 4
        %v431 = vrot.slane %v408, 4
        %v432 = vsel %vm285, %v430, %v431
        %v437 = vadd.f32 %v423, %v429
        %v438 = vadd.f32 %v424, %v428
        %v439 = vadd.f32 %v425, %v432
        %v440 = vadd.f32 %v426, %v431
        %v441 = vrot.slane %v238, 6
        %v442 = vrot.slane %v239, 6
        %v443 = vsel %vm300, %v441, %v442
        %v444 = vrot.slane %v240, 6
        %v445 = vrot.slane %v241, 6
        %v446 = vsel %vm300, %v444, %v445
        %v451 = vadd.f32 %v437, %v443
        %v452 = vadd.f32 %v438, %v442
        %v453 = vadd.f32 %v439, %v446
        %v454 = vadd.f32 %v440, %v445
        %459 = vrot.lane.b32.xlu0 %v451, 127
        %v460 = vpop.permute.xlu0 %459
        %461 = vrot.lane.b32.xlu0 %v452, 127
        %v462 = vpop.permute.xlu0 %461
        %463 = vrot.lane.b32.xlu0 %v453, 127
        %v464 = vpop.permute.xlu0 %463
        %465 = vrot.lane.b32.xlu0 %v454, 127
        %v466 = vpop.permute.xlu0 %465
        %v471 = vadd.f32 %v451, %v460
        %v472 = vadd.f32 %v452, %v462
        %v473 = vadd.f32 %v453, %v464
        %v474 = vadd.f32 %v454, %v466
        %479 = vrot.lane.b32.xlu0 %v471, 126
        %v480 = vpop.permute.xlu0 %479
        %481 = vrot.lane.b32.xlu0 %v472, 126
        %v482 = vpop.permute.xlu0 %481
        %483 = vrot.lane.b32.xlu0 %v473, 126
        %v484 = vpop.permute.xlu0 %483
        %485 = vrot.lane.b32.xlu0 %v474, 126
        %v486 = vpop.permute.xlu0 %485
        %v491 = vadd.f32 %v471, %v480
        %v492 = vadd.f32 %v472, %v482
        %v493 = vadd.f32 %v473, %v484
        %v494 = vadd.f32 %v474, %v486
        %495 = vrot.lane.b32.xlu0 %v471, 124
        %v496 = vpop.permute.xlu0 %495
        %497 = vrot.lane.b32.xlu0 %v472, 124
        %v498 = vpop.permute.xlu0 %497
        %499 = vrot.lane.b32.xlu0 %v473, 124
        %v500 = vpop.permute.xlu0 %499
        %501 = vrot.lane.b32.xlu0 %v474, 124
        %v502 = vpop.permute.xlu0 %501
        %v507 = vadd.f32 %v491, %v496
        %v508 = vadd.f32 %v492, %v498
        %v509 = vadd.f32 %v493, %v500
        %v510 = vadd.f32 %v494, %v502
        %511 = vrot.lane.b32.xlu0 %v451, 122
        %v512 = vpop.permute.xlu0 %511
        %513 = vrot.lane.b32.xlu0 %v452, 122
        %v514 = vpop.permute.xlu0 %513
        %515 = vrot.lane.b32.xlu0 %v453, 122
        %v516 = vpop.permute.xlu0 %515
        %517 = vrot.lane.b32.xlu0 %v454, 122
        %v518 = vpop.permute.xlu0 %517
        %v523 = vadd.f32 %v507, %v512
        %v524 = vadd.f32 %v508, %v514
        %v525 = vadd.f32 %v509, %v516
        %v526 = vadd.f32 %v510, %v518
        %v527 = vmul.f32 %v523, 0.020408163
        %v528 = vmul.f32 %v524, 0.020408163
        %v529 = vmul.f32 %v525, 0.020408163
        %v530 = vmul.f32 %v526, 0.020408163
        %v531 = vmul.f32 %v234, %v234
        %v532 = vmul.f32 %v235, %v235
        %v533 = vmul.f32 %v236, %v236
        %v534 = vmul.f32 %v237, %v237
        %v539 = vrot.slane %v531, 1
        %v540 = vrot.slane %v532, 1
        %v541 = vsel %vm251, %v539, %v540
        %v542 = vrot.slane %v533, 1
        %v543 = vrot.slane %v534, 1
        %v544 = vsel %vm251, %v542, %v543
        %v549 = vadd.f32 %v531, %v541
        %v550 = vadd.f32 %v532, %v540
        %v551 = vadd.f32 %v533, %v544
        %v552 = vadd.f32 %v534, %v543
        %v557 = vrot.slane %v549, 2
        %v558 = vrot.slane %v550, 2
        %v559 = vsel %vm270, %v557, %v558
        %v560 = vrot.slane %v551, 2
        %v561 = vrot.slane %v552, 2
        %v562 = vsel %vm270, %v560, %v561
        %v567 = vadd.f32 %v549, %v559
        %v568 = vadd.f32 %v550, %v558
        %v569 = vadd.f32 %v551, %v562
        %v570 = vadd.f32 %v552, %v561
        %v571 = vrot.slane %v549, 4
        %v572 = vrot.slane %v550, 4
        %v573 = vsel %vm285, %v571, %v572
        %v574 = vrot.slane %v551, 4
        %v575 = vrot.slane %v552, 4
        %v576 = vsel %vm285, %v574, %v575
        %v581 = vadd.f32 %v567, %v573
        %v582 = vadd.f32 %v568, %v572
        %v583 = vadd.f32 %v569, %v576
        %v584 = vadd.f32 %v570, %v575
        %v585 = vrot.slane %v531, 6
        %v586 = vrot.slane %v532, 6
        %v587 = vsel %vm300, %v585, %v586
        %v588 = vrot.slane %v533, 6
        %v589 = vrot.slane %v534, 6
        %v590 = vsel %vm300, %v588, %v589
        %v595 = vadd.f32 %v581, %v587
        %v596 = vadd.f32 %v582, %v586
        %v597 = vadd.f32 %v583, %v590
        %v598 = vadd.f32 %v584, %v589
        %603 = vrot.lane.b32.xlu0 %v595, 127
        %v604 = vpop.permute.xlu0 %603
        %605 = vrot.lane.b32.xlu0 %v596, 127
        %v606 = vpop.permute.xlu0 %605
        %607 = vrot.lane.b32.xlu0 %v597, 127
        %v608 = vpop.permute.xlu0 %607
        %609 = vrot.lane.b32.xlu0 %v598, 127
        %v610 = vpop.permute.xlu0 %609
        %v615 = vadd.f32 %v595, %v604
        %v616 = vadd.f32 %v596, %v606
        %v617 = vadd.f32 %v597, %v608
        %v618 = vadd.f32 %v598, %v610
        %623 = vrot.lane.b32.xlu0 %v615, 126
        %v624 = vpop.permute.xlu0 %623
        %625 = vrot.lane.b32.xlu0 %v616, 126
        %v626 = vpop.permute.xlu0 %625
        %627 = vrot.lane.b32.xlu0 %v617, 126
        %v628 = vpop.permute.xlu0 %627
        %629 = vrot.lane.b32.xlu0 %v618, 126
        %v630 = vpop.permute.xlu0 %629
        %v635 = vadd.f32 %v615, %v624
        %v636 = vadd.f32 %v616, %v626
        %v637 = vadd.f32 %v617, %v628
        %v638 = vadd.f32 %v618, %v630
        %639 = vrot.lane.b32.xlu0 %v615, 124
        %v640 = vpop.permute.xlu0 %639
        %641 = vrot.lane.b32.xlu0 %v616, 124
        %v642 = vpop.permute.xlu0 %641
        %643 = vrot.lane.b32.xlu0 %v617, 124
        %v644 = vpop.permute.xlu0 %643
        %645 = vrot.lane.b32.xlu0 %v618, 124
        %v646 = vpop.permute.xlu0 %645
        %v651 = vadd.f32 %v635, %v640
        %v652 = vadd.f32 %v636, %v642
        %v653 = vadd.f32 %v637, %v644
        %v654 = vadd.f32 %v638, %v646
        %655 = vrot.lane.b32.xlu0 %v595, 122
        %v656 = vpop.permute.xlu0 %655
        %657 = vrot.lane.b32.xlu0 %v596, 122
        %v658 = vpop.permute.xlu0 %657
        %659 = vrot.lane.b32.xlu0 %v597, 122
        %v660 = vpop.permute.xlu0 %659
        %661 = vrot.lane.b32.xlu0 %v598, 122
        %v662 = vpop.permute.xlu0 %661
        %v667 = vadd.f32 %v651, %v656
        %v668 = vadd.f32 %v652, %v658
        %v669 = vadd.f32 %v653, %v660
        %v670 = vadd.f32 %v654, %v662
        %v671 = vmul.f32 %v667, 0.020408163
        %v672 = vmul.f32 %v668, 0.020408163
        %v673 = vmul.f32 %v669, 0.020408163
        %v674 = vmul.f32 %v670, 0.020408163
        %v675 = vmul.f32 %v238, %v238
        %v676 = vmul.f32 %v239, %v239
        %v677 = vmul.f32 %v240, %v240
        %v678 = vmul.f32 %v241, %v241
        %v683 = vrot.slane %v675, 1
        %v684 = vrot.slane %v676, 1
        %v685 = vsel %vm251, %v683, %v684
        %v686 = vrot.slane %v677, 1
        %v687 = vrot.slane %v678, 1
        %v688 = vsel %vm251, %v686, %v687
        %v693 = vadd.f32 %v675, %v685
        %v694 = vadd.f32 %v676, %v684
        %v695 = vadd.f32 %v677, %v688
        %v696 = vadd.f32 %v678, %v687
        %v701 = vrot.slane %v693, 2
        %v702 = vrot.slane %v694, 2
        %v703 = vsel %vm270, %v701, %v702
        %v704 = vrot.slane %v695, 2
        %v705 = vrot.slane %v696, 2
        %v706 = vsel %vm270, %v704, %v705
        %v711 = vadd.f32 %v693, %v703
        %v712 = vadd.f32 %v694, %v702
        %v713 = vadd.f32 %v695, %v706
        %v714 = vadd.f32 %v696, %v705
        %v715 = vrot.slane %v693, 4
        %v716 = vrot.slane %v694, 4
        %v717 = vsel %vm285, %v715, %v716
        %v718 = vrot.slane %v695, 4
        %v719 = vrot.slane %v696, 4
        %v720 = vsel %vm285, %v718, %v719
        %v725 = vadd.f32 %v711, %v717
        %v726 = vadd.f32 %v712, %v716
        %v727 = vadd.f32 %v713, %v720
        %v728 = vadd.f32 %v714, %v719
        %v729 = vrot.slane %v675, 6
        %v730 = vrot.slane %v676, 6
        %v731 = vsel %vm300, %v729, %v730
        %v732 = vrot.slane %v677, 6
        %v733 = vrot.slane %v678, 6
        %v734 = vsel %vm300, %v732, %v733
        %v739 = vadd.f32 %v725, %v731
        %v740 = vadd.f32 %v726, %v730
        %v741 = vadd.f32 %v727, %v734
        %v742 = vadd.f32 %v728, %v733
        %747 = vrot.lane.b32.xlu0 %v739, 127
        %v748 = vpop.permute.xlu0 %747
        %749 = vrot.lane.b32.xlu0 %v740, 127
        %v750 = vpop.permute.xlu0 %749
        %751 = vrot.lane.b32.xlu0 %v741, 127
        %v752 = vpop.permute.xlu0 %751
        %753 = vrot.lane.b32.xlu0 %v742, 127
        %v754 = vpop.permute.xlu0 %753
        %v759 = vadd.f32 %v739, %v748
        %v760 = vadd.f32 %v740, %v750
        %v761 = vadd.f32 %v741, %v752
        %v762 = vadd.f32 %v742, %v754
        %767 = vrot.lane.b32.xlu0 %v759, 126
        %v768 = vpop.permute.xlu0 %767
        %769 = vrot.lane.b32.xlu0 %v760, 126
        %v770 = vpop.permute.xlu0 %769
        %771 = vrot.lane.b32.xlu0 %v761, 126
        %v772 = vpop.permute.xlu0 %771
        %773 = vrot.lane.b32.xlu0 %v762, 126
        %v774 = vpop.permute.xlu0 %773
        %v779 = vadd.f32 %v759, %v768
        %v780 = vadd.f32 %v760, %v770
        %v781 = vadd.f32 %v761, %v772
        %v782 = vadd.f32 %v762, %v774
        %783 = vrot.lane.b32.xlu0 %v759, 124
        %v784 = vpop.permute.xlu0 %783
        %785 = vrot.lane.b32.xlu0 %v760, 124
        %v786 = vpop.permute.xlu0 %785
        %787 = vrot.lane.b32.xlu0 %v761, 124
        %v788 = vpop.permute.xlu0 %787
        %789 = vrot.lane.b32.xlu0 %v762, 124
        %v790 = vpop.permute.xlu0 %789
        %v795 = vadd.f32 %v779, %v784
        %v796 = vadd.f32 %v780, %v786
        %v797 = vadd.f32 %v781, %v788
        %v798 = vadd.f32 %v782, %v790
        %799 = vrot.lane.b32.xlu0 %v739, 122
        %v800 = vpop.permute.xlu0 %799
        %801 = vrot.lane.b32.xlu0 %v740, 122
        %v802 = vpop.permute.xlu0 %801
        %803 = vrot.lane.b32.xlu0 %v741, 122
        %v804 = vpop.permute.xlu0 %803
        %805 = vrot.lane.b32.xlu0 %v742, 122
        %v806 = vpop.permute.xlu0 %805
        %v811 = vadd.f32 %v795, %v800
        %v812 = vadd.f32 %v796, %v802
        %v813 = vadd.f32 %v797, %v804
        %v814 = vadd.f32 %v798, %v806
        %v815 = vmul.f32 %v811, 0.020408163
        %v816 = vmul.f32 %v812, 0.020408163
        %v817 = vmul.f32 %v813, 0.020408163
        %v818 = vmul.f32 %v814, 0.020408163
        %v819 = vmul.f32 %v234, %v238
        %v820 = vmul.f32 %v235, %v239
        %v821 = vmul.f32 %v236, %v240
        %v822 = vmul.f32 %v237, %v241
        %v827 = vrot.slane %v819, 1
        %v828 = vrot.slane %v820, 1
        %v829 = vsel %vm251, %v827, %v828
        %v830 = vrot.slane %v821, 1
        %v831 = vrot.slane %v822, 1
        %v832 = vsel %vm251, %v830, %v831
        %v837 = vadd.f32 %v819, %v829
        %v838 = vadd.f32 %v820, %v828
        %v839 = vadd.f32 %v821, %v832
        %v840 = vadd.f32 %v822, %v831
        %v845 = vrot.slane %v837, 2
        %v846 = vrot.slane %v838, 2
        %v847 = vsel %vm270, %v845, %v846
        %v848 = vrot.slane %v839, 2
        %v849 = vrot.slane %v840, 2
        %v850 = vsel %vm270, %v848, %v849
        %v855 = vadd.f32 %v837, %v847
        %v856 = vadd.f32 %v838, %v846
        %v857 = vadd.f32 %v839, %v850
        %v858 = vadd.f32 %v840, %v849
        %v859 = vrot.slane %v837, 4
        %v860 = vrot.slane %v838, 4
        %v861 = vsel %vm285, %v859, %v860
        %v862 = vrot.slane %v839, 4
        %v863 = vrot.slane %v840, 4
        %v864 = vsel %vm285, %v862, %v863
        %v869 = vadd.f32 %v855, %v861
        %v870 = vadd.f32 %v856, %v860
        %v871 = vadd.f32 %v857, %v864
        %v872 = vadd.f32 %v858, %v863
        %v873 = vrot.slane %v819, 6
        %v874 = vrot.slane %v820, 6
        %v875 = vsel %vm300, %v873, %v874
        %v876 = vrot.slane %v821, 6
        %v877 = vrot.slane %v822, 6
        %v878 = vsel %vm300, %v876, %v877
        %v883 = vadd.f32 %v869, %v875
        %v884 = vadd.f32 %v870, %v874
        %v885 = vadd.f32 %v871, %v878
        %v886 = vadd.f32 %v872, %v877
        %891 = vrot.lane.b32.xlu0 %v883, 127
        %v892 = vpop.permute.xlu0 %891
        %893 = vrot.lane.b32.xlu0 %v884, 127
        %v894 = vpop.permute.xlu0 %893
        %895 = vrot.lane.b32.xlu0 %v885, 127
        %v896 = vpop.permute.xlu0 %895
        %897 = vrot.lane.b32.xlu0 %v886, 127
        %v898 = vpop.permute.xlu0 %897
        %v903 = vadd.f32 %v883, %v892
        %v904 = vadd.f32 %v884, %v894
        %v905 = vadd.f32 %v885, %v896
        %v906 = vadd.f32 %v886, %v898
        %911 = vrot.lane.b32.xlu0 %v903, 126
        %v912 = vpop.permute.xlu0 %911
        %913 = vrot.lane.b32.xlu0 %v904, 126
        %v914 = vpop.permute.xlu0 %913
        %915 = vrot.lane.b32.xlu0 %v905, 126
        %v916 = vpop.permute.xlu0 %915
        %917 = vrot.lane.b32.xlu0 %v906, 126
        %v918 = vpop.permute.xlu0 %917
        %v923 = vadd.f32 %v903, %v912
        %v924 = vadd.f32 %v904, %v914
        %v925 = vadd.f32 %v905, %v916
        %v926 = vadd.f32 %v906, %v918
        %927 = vrot.lane.b32.xlu0 %v903, 124
        %v928 = vpop.permute.xlu0 %927
        %929 = vrot.lane.b32.xlu0 %v904, 124
        %v930 = vpop.permute.xlu0 %929
        %931 = vrot.lane.b32.xlu0 %v905, 124
        %v932 = vpop.permute.xlu0 %931
        %933 = vrot.lane.b32.xlu0 %v906, 124
        %v934 = vpop.permute.xlu0 %933
        %v939 = vadd.f32 %v923, %v928
        %v940 = vadd.f32 %v924, %v930
        %v941 = vadd.f32 %v925, %v932
        %v942 = vadd.f32 %v926, %v934
        %943 = vrot.lane.b32.xlu0 %v883, 122
        %v944 = vpop.permute.xlu0 %943
        %945 = vrot.lane.b32.xlu0 %v884, 122
        %v946 = vpop.permute.xlu0 %945
        %947 = vrot.lane.b32.xlu0 %v885, 122
        %v948 = vpop.permute.xlu0 %947
        %949 = vrot.lane.b32.xlu0 %v886, 122
        %v950 = vpop.permute.xlu0 %949
        %v955 = vadd.f32 %v939, %v944
        %v956 = vadd.f32 %v940, %v946
        %v957 = vadd.f32 %v941, %v948
        %v958 = vadd.f32 %v942, %v950
        %v959 = vmul.f32 %v955, 0.020408163
        %v960 = vmul.f32 %v956, 0.020408163
        %v961 = vmul.f32 %v957, 0.020408163
        %v962 = vmul.f32 %v958, 0.020408163
        %v963 = vmul.f32 %v387, %v387
        %v964 = vmul.f32 %v388, %v388
        %v965 = vmul.f32 %v389, %v389
        %v966 = vmul.f32 %v390, %v390
        %v967 = vmul.f32 %v527, %v527
        %v968 = vmul.f32 %v528, %v528
        %v969 = vmul.f32 %v529, %v529
        %v970 = vmul.f32 %v530, %v530
        %v971 = vmul.f32 %v387, %v527
        %v972 = vmul.f32 %v388, %v528
        %v973 = vmul.f32 %v389, %v529
        %v974 = vmul.f32 %v390, %v530
        %v975 = vadd.f32 %v963, %v967
        %v976 = vadd.f32 %v964, %v968
        %v977 = vadd.f32 %v965, %v969
        %v978 = vadd.f32 %v966, %v970
        %v979 = vsub.f32 %v959, %v971
        %v980 = vsub.f32 %v960, %v972
        %v981 = vsub.f32 %v961, %v973
        %v982 = vsub.f32 %v962, %v974
        %v983 = vmul.f32 %v979, 1.0208334
        %v984 = vmul.f32 %v980, 1.0208334
        %v985 = vmul.f32 %v981, 1.0208334
        %v986 = vmul.f32 %v982, 1.0208334
        %v987 = vadd.f32 %v671, %v815
        %v988 = vadd.f32 %v672, %v816
        %v989 = vadd.f32 %v673, %v817
        %v990 = vadd.f32 %v674, %v818
        %v991 = vsub.f32 %v987, %v975
        %v992 = vsub.f32 %v988, %v976
        %v993 = vsub.f32 %v989, %v977
        %v994 = vsub.f32 %v990, %v978
        %v995 = vmul.f32 %v991, 1.0208334
        %v996 = vmul.f32 %v992, 1.0208334
        %v997 = vmul.f32 %v993, 1.0208334
        %v998 = vmul.f32 %v994, 1.0208334
        %v999 = vmul.f32 %v971, 2.0
        %v1000 = vmul.f32 %v972, 2.0
        %v1001 = vmul.f32 %v973, 2.0
        %v1002 = vmul.f32 %v974, 2.0
        %v1003 = vstv %s244
        %v1004 = vadd.f32 %v999, %v1003
        %v1005 = vadd.f32 %v1000, %v1003
        %v1006 = vadd.f32 %v1001, %v1003
        %v1007 = vadd.f32 %v1002, %v1003
        %v1008 = vmul.f32 %v983, 2.0
        %v1009 = vmul.f32 %v984, 2.0
        %v1010 = vmul.f32 %v985, 2.0
        %v1011 = vmul.f32 %v986, 2.0
        %v1012 = vstv %s246
        %v1013 = vadd.f32 %v1008, %v1012
        %v1014 = vadd.f32 %v1009, %v1012
        %v1015 = vadd.f32 %v1010, %v1012
        %v1016 = vadd.f32 %v1011, %v1012
        %v1017 = vmul.f32 %v1004, %v1013
        %v1018 = vmul.f32 %v1005, %v1014
        %v1019 = vmul.f32 %v1006, %v1015
        %v1020 = vmul.f32 %v1007, %v1016
        %v1021 = vadd.f32 %v975, %v1003
        %v1022 = vadd.f32 %v976, %v1003
        %v1023 = vadd.f32 %v977, %v1003
        %v1024 = vadd.f32 %v978, %v1003
        %v1025 = vadd.f32 %v995, %v1012
        %v1026 = vadd.f32 %v996, %v1012
        %v1027 = vadd.f32 %v997, %v1012
        %v1028 = vadd.f32 %v998, %v1012
        %v1029 = vmul.f32 %v1021, %v1025
        %v1030 = vmul.f32 %v1022, %v1026
        %v1031 = vmul.f32 %v1023, %v1027
        %v1032 = vmul.f32 %v1024, %v1028
        %v1033 = vrcp.pop %v1029
        %v1034 = vmul.f32 %v1017, %v1033
        %v1035 = vrcp.pop %v1030
        %v1036 = vmul.f32 %v1018, %v1035
        %v1037 = vrcp.pop %v1031
        %v1038 = vmul.f32 %v1019, %v1037
        %v1039 = vrcp.pop %v1032
        %v1040 = vmul.f32 %v1020, %v1039
        %vm1041 = vcmask 80896
        %v1042 = vsel %vm1041, %v1034, 0.0
        %1043 = vadd.xlane.f32.xlu0 %v1042
        %v1044 = vpop.xlane.xlu0 %1043
        %vm1045 = vcmask 74752
        %v1046 = vsel %vm1045, %v1036, 0.0
        %1047 = vadd.xlane.f32.xlu0 %v1046
        %v1048 = vpop.xlane.xlu0 %1047
        %v1049 = vsel %vm1041, %v1038, 0.0
        %1050 = vadd.xlane.f32.xlu0 %v1049
        %v1051 = vpop.xlane.xlu0 %1050
        %v1052 = vsel %vm1045, %v1040, 0.0
        %1053 = vadd.xlane.f32.xlu0 %v1052
        %v1054 = vpop.xlane.xlu0 %1053
        %v1059 = vlaneseq
        %v1060 = vand.u32 %v1059, 127
        %v1061 = vlaneseq
        %v1062 = vshrl.u32 %v1061, 7
        %v1063 = vsub.s32 %v1060, %v1062
        %v1064 = vrot.slane %v1044, %v1063
        %v1065 = vadd.s32 %v1060, 4294967288
        %v1066 = vlaneseq
        %v1067 = vshrl.u32 %v1066, 7
        %v1068 = vsub.s32 %v1065, %v1067
        %v1069 = vrot.slane %v1048, %v1068
        %vm1070 = vcmask 130112
        %v1071 = vsel %vm1070, %v1069, %v1064
        %v1072 = vlaneseq
        %v1073 = vshrl.u32 %v1072, 7
        %v1074 = vsub.s32 %v1060, %v1073
        %v1075 = vrot.slane %v1051, %v1074
        %v1076 = vlaneseq
        %v1077 = vshrl.u32 %v1076, 7
        %v1078 = vsub.s32 %v1065, %v1077
        %v1079 = vrot.slane %v1054, %v1078
        %v1080 = vsel %vm1070, %v1079, %v1075
        %vm1081 = vcmask 1041409
        %v1082 = vsel %vm1081, %v1080, %v1071
        %v1084 = vsel %vm1045, %v1082, 0.0
        %1085 = vadd.xlane.f32.xlu0 %v1084
        %v1086 = vpop.xlane.xlu0 %1085
        %1087 = vst [vmem:[%s231] sm:$0x3] %v1086
        %s1088 = sand.u32 %s105, 1
        %s1089 = scalar_lea.sflag [#allocation5], %s1088
        %s1090 = sand.u32 %s105, 1
        %s1091 = smul.addr %s1090, 2
        %s1092 = scalar_lea.vmem [#allocation8], %s1091
        // Predicated region
        $region41: #{tpu_custom_call.1} parent=31 // pred_check
          %p1093 = pneg %p115
        $region42: #{tpu_custom_call.1} parent=31 // pred_check_branch
          %1095 = sbr.rel (%p1093) target = $region44
        $region43: #{tpu_custom_call.1} parent=31 // pred_region
          %s1097 = ssub.s32 32, 32
          %1098 = vsyncadd %s1089, %s1097
          %s1099 = smul.addr %s24, 32
          %s1100 = scalar_lea.hbm %s3, %s1099
          %s1102 = sshll.u32 %s1092, 4
          %s1103 = int_to_ptr.vmem [resolvable:$true] %s1102
          %1105 = dma.vmem_to_hbm [thread:$0]  %s1103, 32, %s1100, %s1089
        $region44: #{tpu_custom_call.1} parent=31 // pred_fallthru
          _
      $region32: #{tpu_custom_call.1} parent=5 // pred_fallthru
        _
      %p1106 = scmp.le.s32.totalorder 2, %s19
      // Predicated region
      $region45: #{tpu_custom_call.1} parent=5 // pred_check
        %p1107 = pneg %p1106
      $region46: #{tpu_custom_call.1} parent=5 // pred_check_branch
        %1109 = sbr.rel (%p1107) target = $region48
      $region47: #{tpu_custom_call.1} parent=5 // pred_region
        %s1110 = ssub.s32 %s19, 2
        // Predicated region
        $region49: #{tpu_custom_call.1} parent=47 // pred_check
          %p1111 = pneg %p121
        $region50: #{tpu_custom_call.1} parent=47 // pred_check_branch
          %1113 = sbr.rel (%p1111) target = $region52
        $region51: #{tpu_custom_call.1} parent=47 // pred_region
          %s1114 = sand.u32 %s106, 1
          %s1115 = scalar_lea.sflag [#allocation5], %s1114
          %s1116 = sand.u32 %s106, 1
          %s1117 = smul.addr %s1116, 2
          %s1118 = scalar_lea.vmem [#allocation8], %s1117
          %1119 = dma.done %s1115, 32
        $region52: #{tpu_custom_call.1} parent=47 // pred_fallthru
          _
      $region48: #{tpu_custom_call.1} parent=5 // pred_fallthru
        _
    $region6: #{tpu_custom_call.1} parent=1 // loop_footer
      %s23 = sadd.s32 1, %s19
    $region7: #{tpu_custom_call.1} parent=1 // loop_footer_branch
      %18 = sbr.rel target = $region3
    $region8: #{tpu_custom_call.1} parent=1 // loop_exit
      _
    %1120 = vsyncpa [#allocation4], 1
    %s1121 = scalar_lea.sflag [#allocation4], 1
    %1122 = vsyncpa %s1121, 1
    %1123 = vsyncpa [#allocation7], 1
    %s1124 = scalar_lea.sflag [#allocation7], 1
    %1125 = vsyncpa %s1124, 1
    %1126 = vsyncpa [#allocation5], 1
    %s1127 = scalar_lea.sflag [#allocation5], 1
    %1128 = vsyncpa %s1127, 1

</llo_original>
